<compile_context>
chip_gen: v5e
topology: v5e:2x2
jax: 0.10.0
libtpu: 0.0.40
codegen_flags: <defaults>
</compile_context>

<pallas_src>
import functools

import jax
import jax.numpy as jnp
from jax.experimental import pallas as pl
from jax.experimental.pallas import tpu as pltpu


def _lora_qkv_kernel(x_ref, wqkv_ref, bqkv_ref, a_ref, b_ref,
                     out_ref, acc_ref, xa_ref, *, dim):
    """One (tm, tk) grid step of the fused qkv + LoRA forward.

    Grid = (M // tm, D // tk); axis 0 tiles the rows (parallel), axis 1 is the
    contraction over the hidden dim (arbitrary).  acc_ref (tm, 3D) and
    xa_ref (tm, 2r) are f32 accumulators that live across the K axis.
    """
    k = pl.program_id(1)
    nk = pl.num_programs(1)

    @pl.when(k == 0)
    def _init():
        # Fold the bias into the accumulator init so it is added exactly once.
        acc_ref[...] = jnp.zeros_like(acc_ref) + bqkv_ref[...].astype(jnp.float32)
        xa_ref[...] = jnp.zeros_like(xa_ref)

    x = x_ref[...]  # native dtype straight into the MXU, f32 accumulation
    acc_ref[...] += jnp.dot(x, wqkv_ref[...], preferred_element_type=jnp.float32)
    xa_ref[...] += jnp.dot(x, a_ref[...], preferred_element_type=jnp.float32)

    @pl.when(k == nk - 1)
    def _finish():
        # LoRA up-projection on the tiny rank-space activation.  The LoRA
        # scaling and the q/k split are pre-folded into the block-diagonal
        # b_ref, so this single small matmul yields [delta_q | delta_k].
        delta = jnp.dot(xa_ref[...], b_ref[...],
                        preferred_element_type=jnp.float32)
        base = acc_ref[...]
        # Write the output in column slabs: q/k get their delta, v is copied.
        out_ref[:, :2 * dim] = (base[:, :2 * dim] + delta).astype(out_ref.dtype)
        out_ref[:, 2 * dim:] = base[:, 2 * dim:].astype(out_ref.dtype)


def _pick_tile(total, candidates, align):
    """Largest candidate that divides `total` and respects `align`; else full."""
    for c in candidates:
        if c <= total and total % c == 0 and c % align == 0:
            return c
    return total


def lora_qkv_forward(x, w_qkv, b_qkv, a_q, b_q, a_k, b_k, scaling_q, scaling_k):
    """x: (B, S, D).  Weights pre-transposed to (in, out):
         w_qkv (D, 3D), b_qkv (3D,), a_* (D, r), b_* (r, D).
       Returns (B, S, 3D)."""
    B, S, D = x.shape
    M = B * S
    r = a_q.shape[1]
    out_dim = w_qkv.shape[1]  # 3 * D
    x2 = x.reshape(M, D)

    # Fuse the two LoRA branches: one packed down-projection (D, 2r) and one
    # block-diagonal up-projection (2r, 2D) with the scaling folded in.
    a_packed = jnp.concatenate([a_q, a_k], axis=1)                       # (D, 2r)
    z = jnp.zeros((r, D), dtype=b_q.dtype)
    b_packed = jnp.concatenate(
        [jnp.concatenate([b_q * scaling_q, z], axis=1),
         jnp.concatenate([z, b_k * scaling_k], axis=1)], axis=0)         # (2r, 2D)
    bias2 = b_qkv.reshape(1, out_dim)

    # Tile sizes: rows (sublane-aligned) and the contraction over D
    # (lane-aligned).  Small/odd shapes fall back to the full extent.
    tm = _pick_tile(M, (512, 256, 128, 8), 8)
    tk = _pick_tile(D, (1024, 512, 256, 128), 128)

    kernel = functools.partial(_lora_qkv_kernel, dim=D)

    flops = (2 * M * D * out_dim            # base projection
             + 2 * M * D * (2 * r)          # LoRA down-projection
             + 2 * M * (2 * r) * (2 * D))   # LoRA up-projection
    bytes_accessed = (x2.size * x2.dtype.itemsize
                      + w_qkv.size * w_qkv.dtype.itemsize
                      + bias2.size * bias2.dtype.itemsize
                      + a_packed.size * a_packed.dtype.itemsize
                      + b_packed.size * b_packed.dtype.itemsize
                      + M * out_dim * x.dtype.itemsize)

    out2 = pl.pallas_call(
        kernel,
        out_shape=jax.ShapeDtypeStruct((M, out_dim), x.dtype),
        grid_spec=pltpu.PrefetchScalarGridSpec(
            num_scalar_prefetch=0,
            grid=(M // tm, D // tk),
            in_specs=[
                pl.BlockSpec((tm, tk), lambda i, k: (i, k)),         # x tile
                pl.BlockSpec((tk, out_dim), lambda i, k: (k, 0)),    # W_qkv K-slice
                pl.BlockSpec((1, out_dim), lambda i, k: (0, 0)),     # bias, resident
                pl.BlockSpec((tk, 2 * r), lambda i, k: (k, 0)),      # packed A K-slice
                pl.BlockSpec((2 * r, 2 * D), lambda i, k: (0, 0)),   # packed B, resident
            ],
            out_specs=pl.BlockSpec((tm, out_dim), lambda i, k: (i, 0)),
            scratch_shapes=[
                pltpu.VMEM((tm, out_dim), jnp.float32),   # base accumulator
                pltpu.VMEM((tm, 2 * r), jnp.float32),     # LoRA down-proj accumulator
            ],
        ),
        compiler_params=pltpu.CompilerParams(
            dimension_semantics=("parallel", "arbitrary"),
            vmem_limit_bytes=64 * 1024 * 1024,
        ),
        cost_estimate=pl.CostEstimate(
            flops=flops, transcendentals=0, bytes_accessed=bytes_accessed),
    )(x2, w_qkv, bias2, a_packed, b_packed)

    return out2.reshape(B, S, out_dim)


def _reference(x, w_qkv, b_qkv, a_q, b_q, a_k, b_k, scaling_q, scaling_k):
    qkv = x @ w_qkv + b_qkv
    D = x.shape[-1]
    q, k, v = qkv[..., :D], qkv[..., D:2 * D], qkv[..., 2 * D:]
    dq = (x @ a_q) @ b_q * scaling_q
    dk = (x @ a_k) @ b_k * scaling_k
    return jnp.concatenate([q + dq, k + dk, v], axis=-1)


if __name__ == "__main__":
    key = jax.random.PRNGKey(0)
    # Small but non-trivial: D=256 gives 2 K-steps (tk=128) and M=16 gives
    # 2 row-steps (tm=8), so the accumulator / pl.when logic is exercised.
    B, S, D = 2, 8, 256          # batch, seq, hidden (qkv.in_features)
    rank = 4
    lora_alpha = 8.0
    scaling = lora_alpha / rank

    ks = jax.random.split(key, 8)
    x = jax.random.normal(ks[0], (B, S, D), dtype=jnp.float32)

    # Frozen qkv linear: weight (3D, D) in torch -> stored transposed (D, 3D).
    w_qkv = jax.random.normal(ks[1], (D, 3 * D), dtype=jnp.float32) * 0.05
    b_qkv = jax.random.normal(ks[2], (3 * D,), dtype=jnp.float32) * 0.05

    # LoRA weights (torch shapes: A (r, D), B (D, r)) -> stored transposed.
    # NOTE: torch init zeros lora_B_*; we use small nonzero values so the LoRA
    # path is actually exercised numerically (deterministic synthetic init).
    a_q = jax.random.normal(ks[3], (D, rank), dtype=jnp.float32) * 0.1
    b_q = jax.random.normal(ks[4], (rank, D), dtype=jnp.float32) * 0.1
    a_k = jax.random.normal(ks[5], (D, rank), dtype=jnp.float32) * 0.1
    b_k = jax.random.normal(ks[6], (rank, D), dtype=jnp.float32) * 0.1

    out = lora_qkv_forward(x, w_qkv, b_qkv, a_q, b_q, a_k, b_k, scaling, scaling)
    out = jax.block_until_ready(out)

    ref = _reference(x, w_qkv, b_qkv, a_q, b_q, a_k, b_k, scaling, scaling)
    assert out.shape == (B, S, 3 * D), out.shape
    assert jnp.allclose(out, ref, atol=1e-3, rtol=1e-3), "mismatch vs reference"

    print("KERNEL_OK")
</pallas_src>

<mosaic_0001>
module attributes {stable_mosaic.version = 11 : i64} {
  func.func @_lora_qkv_kernel(%arg0: i32, %arg1: i32, %arg2: memref<8x256xf32, #tpu.memory_space<vmem>>, %arg3: memref<256x768xf32, #tpu.memory_space<vmem>>, %arg4: memref<1x768xf32, #tpu.memory_space<vmem>>, %arg5: memref<256x8xf32, #tpu.memory_space<vmem>>, %arg6: memref<8x512xf32, #tpu.memory_space<vmem>>, %arg7: memref<8x768xf32, #tpu.memory_space<vmem>>, %arg8: memref<8x768xf32, #tpu.memory_space<vmem>>, %arg9: memref<8x8xf32, #tpu.memory_space<vmem>>) attributes {dimension_semantics = [#tpu.dimension_semantics<parallel>, #tpu.dimension_semantics<arbitrary>], iteration_bounds = array<i64: 2, 1>, scalar_prefetch = 0 : i64, scratch_operands = 2 : i64, tpu.core_type = #tpu.core_type<tc>, window_params = [{transform_indices = @transform_0, window_bounds = array<i64: 8, 256>}, {transform_indices = @transform_1, window_bounds = array<i64: 256, 768>}, {pipeline_mode = #tpu.pipeline_mode<synchronous>, transform_indices = @transform_2, window_bounds = array<i64: 1, 768>}, {transform_indices = @transform_3, window_bounds = array<i64: 256, 8>}, {pipeline_mode = #tpu.pipeline_mode<synchronous>, transform_indices = @transform_4, window_bounds = array<i64: 8, 512>}, {transform_indices = @transform_5, window_bounds = array<i64: 8, 768>}]} {
    %c0_i32 = arith.constant 0 : i32
    %0 = arith.cmpi eq, %arg1, %c0_i32 : i32
    %1 = arith.extui %0 : i1 to i32
    %c0_i32_0 = arith.constant 0 : i32
    %2 = arith.cmpi ne, %1, %c0_i32_0 : i32
    scf.if %2 {
      %cst_17 = arith.constant 0.000000e+00 : f32
      %17 = vector.broadcast %cst_17 : f32 to vector<8x768xf32>
      %c0_18 = arith.constant 0 : index
      %c0_19 = arith.constant 0 : index
      %18 = vector.load %arg4[%c0_18, %c0_19] : memref<1x768xf32, #tpu.memory_space<vmem>>, vector<1x768xf32>
      %19 = vector.broadcast %18 : vector<1x768xf32> to vector<8x768xf32>
      %20 = arith.addf %17, %19 : vector<8x768xf32>
      %c0_20 = arith.constant 0 : index
      %c0_21 = arith.constant 0 : index
      %21 = vector.load %arg8[%c0_20, %c0_21] : memref<8x768xf32, #tpu.memory_space<vmem>>, vector<8x768xf32>
      tpu.vector_store %arg8[%c0_20, %c0_21], %20 {strides = array<i32>} : memref<8x768xf32, #tpu.memory_space<vmem>>, vector<8x768xf32>,
      %cst_22 = arith.constant 0.000000e+00 : f32
      %22 = vector.broadcast %cst_22 : f32 to vector<8x8xf32>
      %c0_23 = arith.constant 0 : index
      %c0_24 = arith.constant 0 : index
      %23 = vector.load %arg9[%c0_23, %c0_24] : memref<8x8xf32, #tpu.memory_space<vmem>>, vector<8x8xf32>
      tpu.vector_store %arg9[%c0_23, %c0_24], %22 {strides = array<i32>} : memref<8x8xf32, #tpu.memory_space<vmem>>, vector<8x8xf32>,
    } else {
    }
    %c0 = arith.constant 0 : index
    %c0_1 = arith.constant 0 : index
    %3 = vector.load %arg2[%c0, %c0_1] : memref<8x256xf32, #tpu.memory_space<vmem>>, vector<8x256xf32>
    %c0_2 = arith.constant 0 : index
    %c0_3 = arith.constant 0 : index
    %4 = vector.load %arg8[%c0_2, %c0_3] : memref<8x768xf32, #tpu.memory_space<vmem>>, vector<8x768xf32>
    %c0_4 = arith.constant 0 : index
    %c0_5 = arith.constant 0 : index
    %5 = vector.load %arg3[%c0_4, %c0_5] : memref<256x768xf32, #tpu.memory_space<vmem>>, vector<256x768xf32>
    %cst = arith.constant dense<0.000000e+00> : vector<8x768xf32>
    %6 = tpu.matmul %3, %5, %cst {dimension_numbers = #tpu.dot_dimension_numbers<[1], [0], [0], [1], [0, 0, 1, 1], [], []>} : vector<8x256xf32>, vector<256x768xf32>, vector<8x768xf32> -> vector<8x768xf32>
    %7 = arith.addf %4, %6 : vector<8x768xf32>
    %c0_6 = arith.constant 0 : index
    %c0_7 = arith.constant 0 : index
    %8 = vector.load %arg8[%c0_6, %c0_7] : memref<8x768xf32, #tpu.memory_space<vmem>>, vector<8x768xf32>
    tpu.vector_store %arg8[%c0_6, %c0_7], %7 {strides = array<i32>} : memref<8x768xf32, #tpu.memory_space<vmem>>, vector<8x768xf32>,
    %c0_8 = arith.constant 0 : index
    %c0_9 = arith.constant 0 : index
    %9 = vector.load %arg9[%c0_8, %c0_9] : memref<8x8xf32, #tpu.memory_space<vmem>>, vector<8x8xf32>
    %c0_10 = arith.constant 0 : index
    %c0_11 = arith.constant 0 : index
    %10 = vector.load %arg5[%c0_10, %c0_11] : memref<256x8xf32, #tpu.memory_space<vmem>>, vector<256x8xf32>
    %cst_12 = arith.constant dense<0.000000e+00> : vector<8x8xf32>
    %11 = tpu.matmul %3, %10, %cst_12 {dimension_numbers = #tpu.dot_dimension_numbers<[1], [0], [0], [1], [0, 0, 1, 1], [], []>} : vector<8x256xf32>, vector<256x8xf32>, vector<8x8xf32> -> vector<8x8xf32>
    %12 = arith.addf %9, %11 : vector<8x8xf32>
    %c0_13 = arith.constant 0 : index
    %c0_14 = arith.constant 0 : index
    %13 = vector.load %arg9[%c0_13, %c0_14] : memref<8x8xf32, #tpu.memory_space<vmem>>, vector<8x8xf32>
    tpu.vector_store %arg9[%c0_13, %c0_14], %12 {strides = array<i32>} : memref<8x8xf32, #tpu.memory_space<vmem>>, vector<8x8xf32>,
    %c0_i32_15 = arith.constant 0 : i32
    %14 = arith.cmpi eq, %arg1, %c0_i32_15 : i32
    %15 = arith.extui %14 : i1 to i32
    %c0_i32_16 = arith.constant 0 : i32
    %16 = arith.cmpi ne, %15, %c0_i32_16 : i32
    scf.if %16 {
      %c0_17 = arith.constant 0 : index
      %c0_18 = arith.constant 0 : index
      %17 = vector.load %arg9[%c0_17, %c0_18] : memref<8x8xf32, #tpu.memory_space<vmem>>, vector<8x8xf32>
      %c0_19 = arith.constant 0 : index
      %c0_20 = arith.constant 0 : index
      %18 = vector.load %arg6[%c0_19, %c0_20] : memref<8x512xf32, #tpu.memory_space<vmem>>, vector<8x512xf32>
      %cst_21 = arith.constant dense<0.000000e+00> : vector<8x512xf32>
      %19 = tpu.matmul %17, %18, %cst_21 {dimension_numbers = #tpu.dot_dimension_numbers<[1], [0], [0], [1], [0, 0, 1, 1], [], []>} : vector<8x8xf32>, vector<8x512xf32>, vector<8x512xf32> -> vector<8x512xf32>
      %c0_22 = arith.constant 0 : index
      %c0_23 = arith.constant 0 : index
      %20 = vector.load %arg8[%c0_22, %c0_23] : memref<8x768xf32, #tpu.memory_space<vmem>>, vector<8x768xf32>
      %21 = vector.extract_strided_slice %20 {offsets = [0, 0], sizes = [8, 512], strides = [1, 1]} : vector<8x768xf32> to vector<8x512xf32>
      %22 = arith.addf %21, %19 : vector<8x512xf32>
      %c0_24 = arith.constant 0 : index
      %c0_25 = arith.constant 0 : index
      %23 = vector.load %arg7[%c0_24, %c0_25] : memref<8x768xf32, #tpu.memory_space<vmem>>, vector<8x512xf32>
      tpu.vector_store %arg7[%c0_24, %c0_25], %22 {strides = array<i32>} : memref<8x768xf32, #tpu.memory_space<vmem>>, vector<8x512xf32>,
      %24 = vector.extract_strided_slice %20 {offsets = [0, 512], sizes = [8, 256], strides = [1, 1]} : vector<8x768xf32> to vector<8x256xf32>
      %c0_26 = arith.constant 0 : index
      %c512 = arith.constant 512 : index
      %25 = vector.load %arg7[%c0_26, %c512] : memref<8x768xf32, #tpu.memory_space<vmem>>, vector<8x256xf32>
      tpu.vector_store %arg7[%c0_26, %c512], %24 {strides = array<i32>} : memref<8x768xf32, #tpu.memory_space<vmem>>, vector<8x256xf32>,
    } else {
    }
    return
  }
  func.func @transform_0(%arg0: i32, %arg1: i32) -> (i32, i32) {
    %c0_i32 = arith.constant 0 : i32
    return %arg0, %arg1 : i32, i32
  }
  func.func @transform_1(%arg0: i32, %arg1: i32) -> (i32, i32) {
    %c0_i32 = arith.constant 0 : i32
    %c0_i32_0 = arith.constant 0 : i32
    return %arg1, %c0_i32 : i32, i32
  }
  func.func @transform_2(%arg0: i32, %arg1: i32) -> (i32, i32) {
    %c0_i32 = arith.constant 0 : i32
    %c0_i32_0 = arith.constant 0 : i32
    %c0_i32_1 = arith.constant 0 : i32
    return %c0_i32, %c0_i32_0 : i32, i32
  }
  func.func @transform_3(%arg0: i32, %arg1: i32) -> (i32, i32) {
    %c0_i32 = arith.constant 0 : i32
    %c0_i32_0 = arith.constant 0 : i32
    return %arg1, %c0_i32 : i32, i32
  }
  func.func @transform_4(%arg0: i32, %arg1: i32) -> (i32, i32) {
    %c0_i32 = arith.constant 0 : i32
    %c0_i32_0 = arith.constant 0 : i32
    %c0_i32_1 = arith.constant 0 : i32
    return %c0_i32, %c0_i32_0 : i32, i32
  }
  func.func @transform_5(%arg0: i32, %arg1: i32) -> (i32, i32) {
    %c0_i32 = arith.constant 0 : i32
    %c0_i32_0 = arith.constant 0 : i32
    return %arg0, %c0_i32 : i32, i32
  }
}

</mosaic_0001>

<llo_original>
// kernel: tpu_custom_call.1
$region0: #{tpu_custom_call.1}
  #allocation0 [shape = 'u32[]', space=smem, size = 0x4, offset = 0x4, fixed_abs, tag = 'smem constant byte address 0x4 - core index']
  #allocation1 [shape = 'u32[72,128]{1,0:T(1,128)}', space=vmem, size = 0x9000, scoped, tag = 'internal scratch']
  #allocation2 [shape = 'f32[8,768]{1,0:T(8,128)}', space=vmem, size = 0x6000, scoped, tag = 'scratch operand']
  #allocation3 [shape = 'f32[8,8]{1,0:T(8,128)}', space=vmem, size = 0x1000, scoped, tag = 'scratch operand']
  %s0 = inlined_call_operand.vmem [shape: f32[16,256], index: 0, kind: input, shape index: {}]
  %s1 = inlined_call_operand.hbm [shape: f32[256,768], index: 1, kind: input, shape index: {}]
  %s2 = inlined_call_operand.vmem [shape: f32[1,768], index: 2, kind: input, shape index: {}]
  %s3 = inlined_call_operand.vmem [shape: f32[256,8], index: 3, kind: input, shape index: {}]
  %s4 = inlined_call_operand.vmem [shape: f32[8,512], index: 4, kind: input, shape index: {}]
  %s5 = inlined_call_operand.hbm [shape: f32[16,768], index: 5, kind: output, shape index: {}]
  %s6 = sld [smem:[#allocation0]]
  $region65: #{tpu_custom_call.1} parent=0
    _
  %s8 = ssub.s32 1, %s6
  %s9 = scalar_select 0, %s8, %s6
  $region1: #{tpu_custom_call.1} parent=0
    #allocation4 [shape = 'u8[786432]{0}', space=vmem, size = 0xc0000, scoped, tag = 'input window, operand 1, single buffered']
    #allocation5 [shape = 's32[2]{0}', space=sflag, size = 0x8, scoped, tag = 'scoped memory for tpu_custom_call.1']
    #allocation6 [shape = 's32[2]{0}', space=sflag, size = 0x8, scoped, tag = 'scoped memory for tpu_custom_call.1']
    #allocation7 [shape = 'u8[49152]{0}', space=vmem, size = 0xc000, scoped, tag = 'output window, operand 0']
    %10 = vsyncpa [#allocation5], 0
    %11 = vsyncpa [#allocation6], 0
    %s12 = scalar_lea.sflag [#allocation6], 1
    %13 = vsyncpa %s12, 0
    loop: start=0, step=1, limit=4
    $region2: #{tpu_custom_call.1} parent=1 // loop_pre_header
      _
    $region3: #{tpu_custom_call.1} parent=1 // loop_header
      %s15 = sphi 0, %s19
      %p16 = scmp.ge.s32.totalorder %s15, 4
      %s22 = sphi 0, %s34
      %s23 = sphi 0, %s30
      %s24 = sphi 0, %s22
      %s25 = sphi 0, %s23
      %s26 = sphi 0, %s24
      %s27 = sphi 0, %s25
      %s39 = sphi 0, %s41
      %s42 = sphi 0, %s39
      %s43 = sphi 0, %s42
      %s59 = sphi 0, %s43
      %s65 = sphi 0, %s67
      %s68 = sphi 0, %s65
      %s69 = sphi 0, %s68
      %s85 = sphi 0, %s69
      %s89 = sphi 0, %s89
      %s91 = sphi 0, %s89
      %s92 = sphi 0, %s91
      %s106 = sphi 0, %s92
      %s112 = sphi 0, %s114
      %s115 = sphi 0, %s112
      %s116 = sphi 0, %s115
      %s132 = sphi 0, %s116
      %s136 = sphi 0, %s136
      %s138 = sphi 0, %s136
      %s139 = sphi 0, %s138
      %s153 = sphi 0, %s139
      %s159 = sphi 0, %s161
      %s162 = sphi 0, %s159
      %s163 = sphi 0, %s162
      %s179 = sphi 0, %s163
    $region4: #{tpu_custom_call.1} parent=1 // loop_header_branch
      %18 = sbr.rel (%p16) target = $region8
    $region5: #{tpu_custom_call.1} parent=1 // loop_body
      %s20 = ssub.s32 %s15, 1
      %s21 = ssub.s32 %s15, 2
      %s28 = sadd.s32 1, %s23
      %p29 = scmp.ge.s32.totalorder %s28, 1
      %s30 = scalar_select %p29, 0, %s28
      %s31 = sadd.s32 1, %s22
      %s32 = scalar_select %p29, %s31, %s22
      %p33 = scmp.ge.s32.totalorder %s32, 2
      %s34 = scalar_select %p33, 0, %s32
      %s35 = ssub.s32 %s22, %s34
      %s36 = ssub.s32 %s23, %s30
      %s37 = sor.u32 %s35, %s36
      %p38 = scmp.eq.s32.totalorder %s37, 0
      %s40 = sadd.s32 %s39, 1
      %s41 = scalar_select %p38, %s39, %s40
      %p44 = pneg %p38
      %p45 = scmp.eq.s32.totalorder %s15, 1
      %p46 = por %p44, %p45
      %p47 = scmp.ne.s32.totalorder %s39, %s42
      %p48 = scmp.eq.s32.totalorder %s15, 0
      %p49 = por %p47, %p48
      %p50 = scmp.ne.s32.totalorder %s39, %s42
      %p51 = scmp.eq.s32.totalorder %s20, 1
      %p52 = por %p50, %p51
      %p53 = scmp.ne.s32.totalorder %s42, %s43
      %p54 = scmp.eq.s32.totalorder %s20, 0
      %p55 = por %p53, %p54
      %p56 = scmp.ne.s32.totalorder %s42, %s43
      %p57 = scmp.eq.s32.totalorder %s21, 1
      %p58 = por %p56, %p57
      %p60 = scmp.ne.s32.totalorder %s43, %s59
      %p61 = scmp.eq.s32.totalorder %s21, 0
      %p62 = por %p60, %p61
      %s63 = ssub.s32 %s23, %s30
      %p64 = scmp.eq.s32.totalorder %s63, 0
      %s66 = sadd.s32 %s65, 1
      %s67 = scalar_select %p64, %s65, %s66
      %p70 = pneg %p64
      %p71 = scmp.eq.s32.totalorder %s15, 1
      %p72 = por %p70, %p71
      %p73 = scmp.ne.s32.totalorder %s65, %s68
      %p74 = scmp.eq.s32.totalorder %s15, 0
      %p75 = por %p73, %p74
      %p76 = scmp.ne.s32.totalorder %s65, %s68
      %p77 = scmp.eq.s32.totalorder %s20, 1
      %p78 = por %p76, %p77
      %p79 = scmp.ne.s32.totalorder %s68, %s69
      %p80 = scmp.eq.s32.totalorder %s20, 0
      %p81 = por %p79, %p80
      %p82 = scmp.ne.s32.totalorder %s68, %s69
      %p83 = scmp.eq.s32.totalorder %s21, 1
      %p84 = por %p82, %p83
      %p86 = scmp.ne.s32.totalorder %s69, %s85
      %p87 = scmp.eq.s32.totalorder %s21, 0
      %p88 = por %p86, %p87
      %s90 = sadd.s32 %s89, 1
      %p93 = scmp.eq.s32.totalorder %s15, 1
      %p94 = scmp.ne.s32.totalorder %s89, %s91
      %p95 = scmp.eq.s32.totalorder %s15, 0
      %p96 = por %p94, %p95
      %p97 = scmp.ne.s32.totalorder %s89, %s91
      %p98 = scmp.eq.s32.totalorder %s20, 1
      %p99 = por %p97, %p98
      %p100 = scmp.ne.s32.totalorder %s91, %s92
      %p101 = scmp.eq.s32.totalorder %s20, 0
      %p102 = por %p100, %p101
      %p103 = scmp.ne.s32.totalorder %s91, %s92
      %p104 = scmp.eq.s32.totalorder %s21, 1
      %p105 = por %p103, %p104
      %p107 = scmp.ne.s32.totalorder %s92, %s106
      %p108 = scmp.eq.s32.totalorder %s21, 0
      %p109 = por %p107, %p108
      %s110 = ssub.s32 %s23, %s30
      %p111 = scmp.eq.s32.totalorder %s110, 0
      %s113 = sadd.s32 %s112, 1
      %s114 = scalar_select %p111, %s112, %s113
      %p117 = pneg %p111
      %p118 = scmp.eq.s32.totalorder %s15, 1
      %p119 = por %p117, %p118
      %p120 = scmp.ne.s32.totalorder %s112, %s115
      %p121 = scmp.eq.s32.totalorder %s15, 0
      %p122 = por %p120, %p121
      %p123 = scmp.ne.s32.totalorder %s112, %s115
      %p124 = scmp.eq.s32.totalorder %s20, 1
      %p125 = por %p123, %p124
      %p126 = scmp.ne.s32.totalorder %s115, %s116
      %p127 = scmp.eq.s32.totalorder %s20, 0
      %p128 = por %p126, %p127
      %p129 = scmp.ne.s32.totalorder %s115, %s116
      %p130 = scmp.eq.s32.totalorder %s21, 1
      %p131 = por %p129, %p130
      %p133 = scmp.ne.s32.totalorder %s116, %s132
      %p134 = scmp.eq.s32.totalorder %s21, 0
      %p135 = por %p133, %p134
      %s137 = sadd.s32 %s136, 1
      %p140 = scmp.eq.s32.totalorder %s15, 1
      %p141 = scmp.ne.s32.totalorder %s136, %s138
      %p142 = scmp.eq.s32.totalorder %s15, 0
      %p143 = por %p141, %p142
      %p144 = scmp.ne.s32.totalorder %s136, %s138
      %p145 = scmp.eq.s32.totalorder %s20, 1
      %p146 = por %p144, %p145
      %p147 = scmp.ne.s32.totalorder %s138, %s139
      %p148 = scmp.eq.s32.totalorder %s20, 0
      %p149 = por %p147, %p148
      %p150 = scmp.ne.s32.totalorder %s138, %s139
      %p151 = scmp.eq.s32.totalorder %s21, 1
      %p152 = por %p150, %p151
      %p154 = scmp.ne.s32.totalorder %s139, %s153
      %p155 = scmp.eq.s32.totalorder %s21, 0
      %p156 = por %p154, %p155
      %s157 = ssub.s32 %s22, %s34
      %p158 = scmp.eq.s32.totalorder %s157, 0
      %s160 = sadd.s32 %s159, 1
      %s161 = scalar_select %p158, %s159, %s160
      %p164 = pneg %p158
      %p165 = scmp.eq.s32.totalorder %s15, 1
      %p166 = por %p164, %p165
      %p167 = scmp.ne.s32.totalorder %s159, %s162
      %p168 = scmp.eq.s32.totalorder %s15, 0
      %p169 = por %p167, %p168
      %p170 = scmp.ne.s32.totalorder %s159, %s162
      %p171 = scmp.eq.s32.totalorder %s20, 1
      %p172 = por %p170, %p171
      %p173 = scmp.ne.s32.totalorder %s162, %s163
      %p174 = scmp.eq.s32.totalorder %s20, 0
      %p175 = por %p173, %p174
      %p176 = scmp.ne.s32.totalorder %s162, %s163
      %p177 = scmp.eq.s32.totalorder %s21, 1
      %p178 = por %p176, %p177
      %p180 = scmp.ne.s32.totalorder %s163, %s179
      %p181 = scmp.eq.s32.totalorder %s21, 0
      %p182 = por %p180, %p181
      %p183 = scmp.le.s32.totalorder 1, %s15
      %p184 = scmp.lt.s32.totalorder %s15, 3
      %p185 = pnand %p183, %p184
      %p186 = pneg %p185
      // Predicated region
      $region9: #{tpu_custom_call.1} parent=5 // pred_check
        _
      $region10: #{tpu_custom_call.1} parent=5 // pred_check_branch
        %188 = sbr.rel (%p185) target = $region12
      $region11: #{tpu_custom_call.1} parent=5 // pred_region
        %s189 = ssub.s32 %s15, 1
        // Predicated region
        $region13: #{tpu_custom_call.1} parent=11 // pred_check
          %p190 = pneg %p81
        $region14: #{tpu_custom_call.1} parent=11 // pred_check_branch
          %192 = sbr.rel (%p190) target = $region16
        $region15: #{tpu_custom_call.1} parent=11 // pred_region
          %s193 = smul.u32 32, %s25
          %195 = vsyncadd [#allocation5], 0
          %s196 = smul.addr %s193, 6
          %s197 = smul.addr %s196, 8
          %s198 = scalar_lea.hbm %s1, %s197
          %s199 = sshll.u32 %s198, 4
          %s200 = int_to_ptr.hbm [resolvable:$true] %s199
          %s201 = sshll.u32 [#allocation4], 4
          %s202 = int_to_ptr.vmem [resolvable:$true] %s201
          %207 = dma.hbm_to_vmem [thread:$0]  %s200, 24576, %s202, [#allocation5], 768, 768, 48
        $region16: #{tpu_custom_call.1} parent=11 // pred_fallthru
          _
        // Predicated region
        $region17: #{tpu_custom_call.1} parent=11 // pred_check
          %p208 = pneg %p102
        $region18: #{tpu_custom_call.1} parent=11 // pred_check_branch
          %210 = sbr.rel (%p208) target = $region20
        $region19: #{tpu_custom_call.1} parent=11 // pred_region
          _
        $region20: #{tpu_custom_call.1} parent=11 // pred_fallthru
          _
        // Predicated region
        $region21: #{tpu_custom_call.1} parent=11 // pred_check
          %p211 = pneg %p128
        $region22: #{tpu_custom_call.1} parent=11 // pred_check_branch
          %213 = sbr.rel (%p211) target = $region24
        $region23: #{tpu_custom_call.1} parent=11 // pred_region
          %s214 = smul.u32 32, %s25
          %p215 = scmp.lt.s32.totalorder %s214, 31
          %s216 = scalar_select %p215, %s214, 31
          %s217 = smul.addr %s216, 8
          %s218 = scalar_lea.vmem %s3, %s217
          %s219 = smul.u32 32, %s25
        $region24: #{tpu_custom_call.1} parent=11 // pred_fallthru
          _
        // Predicated region
        $region25: #{tpu_custom_call.1} parent=11 // pred_check
          %p220 = pneg %p149
        $region26: #{tpu_custom_call.1} parent=11 // pred_check_branch
          %222 = sbr.rel (%p220) target = $region28
        $region27: #{tpu_custom_call.1} parent=11 // pred_region
          _
        $region28: #{tpu_custom_call.1} parent=11 // pred_fallthru
          _
      $region12: #{tpu_custom_call.1} parent=5 // pred_fallthru
        _
      %p223 = scmp.lt.s32.totalorder %s15, 2
      // Predicated region
      $region29: #{tpu_custom_call.1} parent=5 // pred_check
        %p224 = pneg %p223
      $region30: #{tpu_custom_call.1} parent=5 // pred_check_branch
        %226 = sbr.rel (%p224) target = $region32
      $region31: #{tpu_custom_call.1} parent=5 // pred_region
        // Predicated region
        $region33: #{tpu_custom_call.1} parent=31 // pred_check
          %p227 = pneg %p49
        $region34: #{tpu_custom_call.1} parent=31 // pred_check_branch
          %229 = sbr.rel (%p227) target = $region36
        $region35: #{tpu_custom_call.1} parent=31 // pred_region
          %s230 = smul.u32 2, %s23
          %p231 = scmp.lt.s32.totalorder %s22, 1
          %s232 = scalar_select %p231, %s22, 1
          %p233 = scmp.lt.s32.totalorder %s230, 1
          %s234 = scalar_select %p233, %s230, 1
          %s235 = smul.addr %s232, 2
          %s236 = sadd.s32 %s234, %s235
          %s237 = smul.addr %s236, 8
          %s238 = scalar_lea.vmem %s0, %s237
          %s239 = smul.u32 2, %s23
        $region36: #{tpu_custom_call.1} parent=31 // pred_fallthru
          _
      $region32: #{tpu_custom_call.1} parent=5 // pred_fallthru
        _
      %p240 = scmp.le.s32.totalorder 1, %s15
      %p241 = scmp.lt.s32.totalorder %s15, 3
      %p242 = pnand %p240, %p241
      %p243 = pneg %p242
      // Predicated region
      $region37: #{tpu_custom_call.1} parent=5 // pred_check
        _
      $region38: #{tpu_custom_call.1} parent=5 // pred_check_branch
        %245 = sbr.rel (%p242) target = $region40
      $region39: #{tpu_custom_call.1} parent=5 // pred_region
        %s246 = ssub.s32 %s15, 1
        // Predicated region
        $region41: #{tpu_custom_call.1} parent=39 // pred_check
          %p247 = pneg %p81
        $region42: #{tpu_custom_call.1} parent=39 // pred_check_branch
          %249 = sbr.rel (%p247) target = $region44
        $region43: #{tpu_custom_call.1} parent=39 // pred_region
          %251 = dma.done [#allocation5], 24576
        $region44: #{tpu_custom_call.1} parent=39 // pred_fallthru
          _
        %s252 = smul.u32 2, %s25
        %p253 = scmp.lt.s32.totalorder %s24, 1
        %s254 = scalar_select %p253, %s24, 1
        %p255 = scmp.lt.s32.totalorder %s252, 1
        %s256 = scalar_select %p255, %s252, 1
        %s257 = smul.addr %s254, 2
        %s258 = sadd.s32 %s256, %s257
        %s259 = smul.addr %s258, 8
        %s260 = scalar_lea.vmem %s0, %s259
        %p261 = pneg %p55
        %p262 = pneg %p52
        %p263 = pneg %p81
        %p264 = pneg %p78
        %p265 = pneg %p102
        %p266 = pneg %p99
        %s267 = smul.u32 32, %s25
        %p268 = scmp.lt.s32.totalorder %s267, 31
        %s269 = scalar_select %p268, %s267, 31
        %s270 = smul.addr %s269, 8
        %s271 = scalar_lea.vmem %s3, %s270
        %p272 = pneg %p128
        %p273 = pneg %p125
        %p274 = pneg %p149
        %p275 = pneg %p146
        %p276 = pneg %p175
        %p277 = pneg %p172
        %s278 = sand.u32 %s162, 1
        %s279 = scalar_lea.sflag [#allocation6], %s278
        %s280 = sand.u32 %s162, 1
        %s281 = smul.addr %s280, 48
        %s282 = scalar_lea.vmem [#allocation7], %s281
        %s283 = smul.u32 2, %s25
        %p284 = scmp.lt.s32.totalorder %s24, 1
        %s285 = scalar_select %p284, %s24, 1
        %p286 = scmp.lt.s32.totalorder %s283, 1
        %s287 = scalar_select %p286, %s283, 1
        %s288 = smul.addr %s285, 2
        %s289 = sadd.s32 %s287, %s288
        %s290 = smul.addr %s289, 8
        %s291 = scalar_lea.vmem %s0, %s290
        %s292 = smul.u32 2, %s25
        %s293 = smul.u32 32, %s25
        %s294 = smul.u32 32, %s25
        %p295 = scmp.lt.s32.totalorder %s294, 31
        %s296 = scalar_select %p295, %s294, 31
        %s297 = smul.addr %s296, 8
        %s298 = scalar_lea.vmem %s3, %s297
        %s299 = smul.u32 32, %s25
        %p300 = scmp.eq.s32.totalorder %s25, 0
        // Predicated region
        $region45: #{tpu_custom_call.1} parent=39 // pred_check
          %p301 = pneg %p300
        $region46: #{tpu_custom_call.1} parent=39 // pred_check_branch
          %303 = sbr.rel (%p301) target = $region48
        $region47: #{tpu_custom_call.1} parent=39 // pred_region
          %v304 = vld [vmem:[%s2] sm:$0x3f]
          %v306 = vperm.slane %v304, 0
          %v307 = vperm.slane %v304, 1
          %v308 = vperm.slane %v304, 2
          %v309 = vperm.slane %v304, 3
          %v310 = vperm.slane %v304, 4
          %v311 = vperm.slane %v304, 5
          %v318 = vadd.f32 %v306, 0.0
          %v319 = vadd.f32 %v307, 0.0
          %v320 = vadd.f32 %v308, 0.0
          %v321 = vadd.f32 %v309, 0.0
          %v322 = vadd.f32 %v310, 0.0
          %v323 = vadd.f32 %v311, 0.0
          %324 = vst [vmem:[#allocation2] sm:$0xff] %v318
          %325 = vst [vmem:[#allocation2 + $0x8] sm:$0xff] %v319
          %326 = vst [vmem:[#allocation2 + $0x10] sm:$0xff] %v320
          %327 = vst [vmem:[#allocation2 + $0x18] sm:$0xff] %v321
          %328 = vst [vmem:[#allocation2 + $0x20] sm:$0xff] %v322
          %329 = vst [vmem:[#allocation2 + $0x28] sm:$0xff] %v323
          %vm330 = vcmask 64512
          %331 = vst.msk [vmem:[#allocation3] sm:$0xff] %vm330, 0.0
        $region48: #{tpu_custom_call.1} parent=39 // pred_fallthru
          _
        %v332 = vld [vmem:[%s291] sm:$0xff]
        %v333 = vld [vmem:[%s291 + $0x8] sm:$0xff]
        %v334 = vld [vmem:[#allocation2] sm:$0xff]
        %v335 = vld [vmem:[#allocation2 + $0x8] sm:$0xff]
        %v336 = vld [vmem:[#allocation2 + $0x10] sm:$0xff]
        %v337 = vld [vmem:[#allocation2 + $0x18] sm:$0xff]
        %v338 = vld [vmem:[#allocation2 + $0x20] sm:$0xff]
        %v339 = vld [vmem:[#allocation2 + $0x28] sm:$0xff]
        %v340 = vld [vmem:[#allocation4] sm:$0xff]
        %v341 = vld [vmem:[#allocation4 + $0x8] sm:$0xff]
        %v342 = vld [vmem:[#allocation4 + $0x10] sm:$0xff]
        %v343 = vld [vmem:[#allocation4 + $0x18] sm:$0xff]
        %v344 = vld [vmem:[#allocation4 + $0x20] sm:$0xff]
        %v345 = vld [vmem:[#allocation4 + $0x28] sm:$0xff]
        %v346 = vld [vmem:[#allocation4 + $0x30] sm:$0xff]
        %v347 = vld [vmem:[#allocation4 + $0x38] sm:$0xff]
        %v348 = vld [vmem:[#allocation4 + $0x40] sm:$0xff]
        %v349 = vld [vmem:[#allocation4 + $0x48] sm:$0xff]
        %v350 = vld [vmem:[#allocation4 + $0x50] sm:$0xff]
        %v351 = vld [vmem:[#allocation4 + $0x58] sm:$0xff]
        %v352 = vld [vmem:[#allocation4 + $0x60] sm:$0xff]
        %v353 = vld [vmem:[#allocation4 + $0x68] sm:$0xff]
        %v354 = vld [vmem:[#allocation4 + $0x70] sm:$0xff]
        %v355 = vld [vmem:[#allocation4 + $0x78] sm:$0xff]
        %v356 = vld [vmem:[#allocation4 + $0x80] sm:$0xff]
        %v357 = vld [vmem:[#allocation4 + $0x88] sm:$0xff]
        %v358 = vld [vmem:[#allocation4 + $0x90] sm:$0xff]
        %v359 = vld [vmem:[#allocation4 + $0x98] sm:$0xff]
        %v360 = vld [vmem:[#allocation4 + $0xa0] sm:$0xff]
        %v361 = vld [vmem:[#allocation4 + $0xa8] sm:$0xff]
        %v362 = vld [vmem:[#allocation4 + $0xb0] sm:$0xff]
        %v363 = vld [vmem:[#allocation4 + $0xb8] sm:$0xff]
        %v364 = vld [vmem:[#allocation4 + $0xc0] sm:$0xff]
        %v365 = vld [vmem:[#allocation4 + $0xc8] sm:$0xff]
        %v366 = vld [vmem:[#allocation4 + $0xd0] sm:$0xff]
        %v367 = vld [vmem:[#allocation4 + $0xd8] sm:$0xff]
        %v368 = vld [vmem:[#allocation4 + $0xe0] sm:$0xff]
        %v369 = vld [vmem:[#allocation4 + $0xe8] sm:$0xff]
        %v370 = vld [vmem:[#allocation4 + $0xf0] sm:$0xff]
        %v371 = vld [vmem:[#allocation4 + $0xf8] sm:$0xff]
        %v372 = vld [vmem:[#allocation4 + $0x100] sm:$0xff]
        %v373 = vld [vmem:[#allocation4 + $0x108] sm:$0xff]
        %v374 = vld [vmem:[#allocation4 + $0x110] sm:$0xff]
        %v375 = vld [vmem:[#allocation4 + $0x118] sm:$0xff]
        %v376 = vld [vmem:[#allocation4 + $0x120] sm:$0xff]
        %v377 = vld [vmem:[#allocation4 + $0x128] sm:$0xff]
        %v378 = vld [vmem:[#allocation4 + $0x130] sm:$0xff]
        %v379 = vld [vmem:[#allocation4 + $0x138] sm:$0xff]
        %v380 = vld [vmem:[#allocation4 + $0x140] sm:$0xff]
        %v381 = vld [vmem:[#allocation4 + $0x148] sm:$0xff]
        %v382 = vld [vmem:[#allocation4 + $0x150] sm:$0xff]
        %v383 = vld [vmem:[#allocation4 + $0x158] sm:$0xff]
        %v384 = vld [vmem:[#allocation4 + $0x160] sm:$0xff]
        %v385 = vld [vmem:[#allocation4 + $0x168] sm:$0xff]
        %v386 = vld [vmem:[#allocation4 + $0x170] sm:$0xff]
        %v387 = vld [vmem:[#allocation4 + $0x178] sm:$0xff]
        %v388 = vld [vmem:[#allocation4 + $0x180] sm:$0xff]
        %v389 = vld [vmem:[#allocation4 + $0x188] sm:$0xff]
        %v390 = vld [vmem:[#allocation4 + $0x190] sm:$0xff]
        %v391 = vld [vmem:[#allocation4 + $0x198] sm:$0xff]
        %v392 = vld [vmem:[#allocation4 + $0x1a0] sm:$0xff]
        %v393 = vld [vmem:[#allocation4 + $0x1a8] sm:$0xff]
        %v394 = vld [vmem:[#allocation4 + $0x1b0] sm:$0xff]
        %v395 = vld [vmem:[#allocation4 + $0x1b8] sm:$0xff]
        %v396 = vld [vmem:[#allocation4 + $0x1c0] sm:$0xff]
        %v397 = vld [vmem:[#allocation4 + $0x1c8] sm:$0xff]
        %v398 = vld [vmem:[#allocation4 + $0x1d0] sm:$0xff]
        %v399 = vld [vmem:[#allocation4 + $0x1d8] sm:$0xff]
        %v400 = vld [vmem:[#allocation4 + $0x1e0] sm:$0xff]
        %v401 = vld [vmem:[#allocation4 + $0x1e8] sm:$0xff]
        %v402 = vld [vmem:[#allocation4 + $0x1f0] sm:$0xff]
        %v403 = vld [vmem:[#allocation4 + $0x1f8] sm:$0xff]
        %v404 = vld [vmem:[#allocation4 + $0x200] sm:$0xff]
        %v405 = vld [vmem:[#allocation4 + $0x208] sm:$0xff]
        %v406 = vld [vmem:[#allocation4 + $0x210] sm:$0xff]
        %v407 = vld [vmem:[#allocation4 + $0x218] sm:$0xff]
        %v408 = vld [vmem:[#allocation4 + $0x220] sm:$0xff]
        %v409 = vld [vmem:[#allocation4 + $0x228] sm:$0xff]
        %v410 = vld [vmem:[#allocation4 + $0x230] sm:$0xff]
        %v411 = vld [vmem:[#allocation4 + $0x238] sm:$0xff]
        %v412 = vld [vmem:[#allocation4 + $0x240] sm:$0xff]
        %v413 = vld [vmem:[#allocation4 + $0x248] sm:$0xff]
        %v414 = vld [vmem:[#allocation4 + $0x250] sm:$0xff]
        %v415 = vld [vmem:[#allocation4 + $0x258] sm:$0xff]
        %v416 = vld [vmem:[#allocation4 + $0x260] sm:$0xff]
        %v417 = vld [vmem:[#allocation4 + $0x268] sm:$0xff]
        %v418 = vld [vmem:[#allocation4 + $0x270] sm:$0xff]
        %v419 = vld [vmem:[#allocation4 + $0x278] sm:$0xff]
        %v420 = vld [vmem:[#allocation4 + $0x280] sm:$0xff]
        %v421 = vld [vmem:[#allocation4 + $0x288] sm:$0xff]
        %v422 = vld [vmem:[#allocation4 + $0x290] sm:$0xff]
        %v423 = vld [vmem:[#allocation4 + $0x298] sm:$0xff]
        %v424 = vld [vmem:[#allocation4 + $0x2a0] sm:$0xff]
        %v425 = vld [vmem:[#allocation4 + $0x2a8] sm:$0xff]
        %v426 = vld [vmem:[#allocation4 + $0x2b0] sm:$0xff]
        %v427 = vld [vmem:[#allocation4 + $0x2b8] sm:$0xff]
        %v428 = vld [vmem:[#allocation4 + $0x2c0] sm:$0xff]
        %v429 = vld [vmem:[#allocation4 + $0x2c8] sm:$0xff]
        %v430 = vld [vmem:[#allocation4 + $0x2d0] sm:$0xff]
        %v431 = vld [vmem:[#allocation4 + $0x2d8] sm:$0xff]
        %v432 = vld [vmem:[#allocation4 + $0x2e0] sm:$0xff]
        %v433 = vld [vmem:[#allocation4 + $0x2e8] sm:$0xff]
        %v434 = vld [vmem:[#allocation4 + $0x2f0] sm:$0xff]
        %v435 = vld [vmem:[#allocation4 + $0x2f8] sm:$0xff]
        %v436 = vld [vmem:[#allocation4 + $0x300] sm:$0xff]
        %v437 = vld [vmem:[#allocation4 + $0x308] sm:$0xff]
        %v438 = vld [vmem:[#allocation4 + $0x310] sm:$0xff]
        %v439 = vld [vmem:[#allocation4 + $0x318] sm:$0xff]
        %v440 = vld [vmem:[#allocation4 + $0x320] sm:$0xff]
        %v441 = vld [vmem:[#allocation4 + $0x328] sm:$0xff]
        %v442 = vld [vmem:[#allocation4 + $0x330] sm:$0xff]
        %v443 = vld [vmem:[#allocation4 + $0x338] sm:$0xff]
        %v444 = vld [vmem:[#allocation4 + $0x340] sm:$0xff]
        %v445 = vld [vmem:[#allocation4 + $0x348] sm:$0xff]
        %v446 = vld [vmem:[#allocation4 + $0x350] sm:$0xff]
        %v447 = vld [vmem:[#allocation4 + $0x358] sm:$0xff]
        %v448 = vld [vmem:[#allocation4 + $0x360] sm:$0xff]
        %v449 = vld [vmem:[#allocation4 + $0x368] sm:$0xff]
        %v450 = vld [vmem:[#allocation4 + $0x370] sm:$0xff]
        %v451 = vld [vmem:[#allocation4 + $0x378] sm:$0xff]
        %v452 = vld [vmem:[#allocation4 + $0x380] sm:$0xff]
        %v453 = vld [vmem:[#allocation4 + $0x388] sm:$0xff]
        %v454 = vld [vmem:[#allocation4 + $0x390] sm:$0xff]
        %v455 = vld [vmem:[#allocation4 + $0x398] sm:$0xff]
        %v456 = vld [vmem:[#allocation4 + $0x3a0] sm:$0xff]
        %v457 = vld [vmem:[#allocation4 + $0x3a8] sm:$0xff]
        %v458 = vld [vmem:[#allocation4 + $0x3b0] sm:$0xff]
        %v459 = vld [vmem:[#allocation4 + $0x3b8] sm:$0xff]
        %v460 = vld [vmem:[#allocation4 + $0x3c0] sm:$0xff]
        %v461 = vld [vmem:[#allocation4 + $0x3c8] sm:$0xff]
        %v462 = vld [vmem:[#allocation4 + $0x3d0] sm:$0xff]
        %v463 = vld [vmem:[#allocation4 + $0x3d8] sm:$0xff]
        %v464 = vld [vmem:[#allocation4 + $0x3e0] sm:$0xff]
        %v465 = vld [vmem:[#allocation4 + $0x3e8] sm:$0xff]
        %v466 = vld [vmem:[#allocation4 + $0x3f0] sm:$0xff]
        %v467 = vld [vmem:[#allocation4 + $0x3f8] sm:$0xff]
        %v468 = vld [vmem:[#allocation4 + $0x400] sm:$0xff]
        %v469 = vld [vmem:[#allocation4 + $0x408] sm:$0xff]
        %v470 = vld [vmem:[#allocation4 + $0x410] sm:$0xff]
        %v471 = vld [vmem:[#allocation4 + $0x418] sm:$0xff]
        %v472 = vld [vmem:[#allocation4 + $0x420] sm:$0xff]
        %v473 = vld [vmem:[#allocation4 + $0x428] sm:$0xff]
        %v474 = vld [vmem:[#allocation4 + $0x430] sm:$0xff]
        %v475 = vld [vmem:[#allocation4 + $0x438] sm:$0xff]
        %v476 = vld [vmem:[#allocation4 + $0x440] sm:$0xff]
        %v477 = vld [vmem:[#allocation4 + $0x448] sm:$0xff]
        %v478 = vld [vmem:[#allocation4 + $0x450] sm:$0xff]
        %v479 = vld [vmem:[#allocation4 + $0x458] sm:$0xff]
        %v480 = vld [vmem:[#allocation4 + $0x460] sm:$0xff]
        %v481 = vld [vmem:[#allocation4 + $0x468] sm:$0xff]
        %v482 = vld [vmem:[#allocation4 + $0x470] sm:$0xff]
        %v483 = vld [vmem:[#allocation4 + $0x478] sm:$0xff]
        %v484 = vld [vmem:[#allocation4 + $0x480] sm:$0xff]
        %v485 = vld [vmem:[#allocation4 + $0x488] sm:$0xff]
        %v486 = vld [vmem:[#allocation4 + $0x490] sm:$0xff]
        %v487 = vld [vmem:[#allocation4 + $0x498] sm:$0xff]
        %v488 = vld [vmem:[#allocation4 + $0x4a0] sm:$0xff]
        %v489 = vld [vmem:[#allocation4 + $0x4a8] sm:$0xff]
        %v490 = vld [vmem:[#allocation4 + $0x4b0] sm:$0xff]
        %v491 = vld [vmem:[#allocation4 + $0x4b8] sm:$0xff]
        %v492 = vld [vmem:[#allocation4 + $0x4c0] sm:$0xff]
        %v493 = vld [vmem:[#allocation4 + $0x4c8] sm:$0xff]
        %v494 = vld [vmem:[#allocation4 + $0x4d0] sm:$0xff]
        %v495 = vld [vmem:[#allocation4 + $0x4d8] sm:$0xff]
        %v496 = vld [vmem:[#allocation4 + $0x4e0] sm:$0xff]
        %v497 = vld [vmem:[#allocation4 + $0x4e8] sm:$0xff]
        %v498 = vld [vmem:[#allocation4 + $0x4f0] sm:$0xff]
        %v499 = vld [vmem:[#allocation4 + $0x4f8] sm:$0xff]
        %v500 = vld [vmem:[#allocation4 + $0x500] sm:$0xff]
        %v501 = vld [vmem:[#allocation4 + $0x508] sm:$0xff]
        %v502 = vld [vmem:[#allocation4 + $0x510] sm:$0xff]
        %v503 = vld [vmem:[#allocation4 + $0x518] sm:$0xff]
        %v504 = vld [vmem:[#allocation4 + $0x520] sm:$0xff]
        %v505 = vld [vmem:[#allocation4 + $0x528] sm:$0xff]
        %v506 = vld [vmem:[#allocation4 + $0x530] sm:$0xff]
        %v507 = vld [vmem:[#allocation4 + $0x538] sm:$0xff]
        %v508 = vld [vmem:[#allocation4 + $0x540] sm:$0xff]
        %v509 = vld [vmem:[#allocation4 + $0x548] sm:$0xff]
        %v510 = vld [vmem:[#allocation4 + $0x550] sm:$0xff]
        %v511 = vld [vmem:[#allocation4 + $0x558] sm:$0xff]
        %v512 = vld [vmem:[#allocation4 + $0x560] sm:$0xff]
        %v513 = vld [vmem:[#allocation4 + $0x568] sm:$0xff]
        %v514 = vld [vmem:[#allocation4 + $0x570] sm:$0xff]
        %v515 = vld [vmem:[#allocation4 + $0x578] sm:$0xff]
        %v516 = vld [vmem:[#allocation4 + $0x580] sm:$0xff]
        %v517 = vld [vmem:[#allocation4 + $0x588] sm:$0xff]
        %v518 = vld [vmem:[#allocation4 + $0x590] sm:$0xff]
        %v519 = vld [vmem:[#allocation4 + $0x598] sm:$0xff]
        %v520 = vld [vmem:[#allocation4 + $0x5a0] sm:$0xff]
        %v521 = vld [vmem:[#allocation4 + $0x5a8] sm:$0xff]
        %v522 = vld [vmem:[#allocation4 + $0x5b0] sm:$0xff]
        %v523 = vld [vmem:[#allocation4 + $0x5b8] sm:$0xff]
        %v524 = vld [vmem:[#allocation4 + $0x5c0] sm:$0xff]
        %v525 = vld [vmem:[#allocation4 + $0x5c8] sm:$0xff]
        %v526 = vld [vmem:[#allocation4 + $0x5d0] sm:$0xff]
        %v527 = vld [vmem:[#allocation4 + $0x5d8] sm:$0xff]
        %v528 = vld [vmem:[#allocation4 + $0x5e0] sm:$0xff]
        %v529 = vld [vmem:[#allocation4 + $0x5e8] sm:$0xff]
        %v530 = vld [vmem:[#allocation4 + $0x5f0] sm:$0xff]
        %v531 = vld [vmem:[#allocation4 + $0x5f8] sm:$0xff]
        %532 = vmatpush.msra.mxu0 %v430
        %533 = vmatpush.msra.mxu0 %v424
        %534 = vmatpush.msra.mxu0 %v418
        %535 = vmatpush.msra.mxu0 %v412
        %536 = vmatpush.msra.mxu0 %v406
        %537 = vmatpush.msra.mxu0 %v400
        %538 = vmatpush.msra.mxu0 %v394
        %539 = vmatpush.msra.mxu0 %v388
        %540 = vmatpush.msra.mxu0 %v382
        %541 = vmatpush.msra.mxu0 %v376
        %542 = vmatpush.msra.mxu0 %v370
        %543 = vmatpush.msra.mxu0 %v364
        %544 = vmatpush.msra.mxu0 %v358
        %545 = vmatpush.msra.mxu0 %v352
        %546 = vmatpush.msra.mxu0 %v346
        %547 = vmatpush.msra.mxu0 %v340
        %548 = vmatmul.f32.gmra.mxu0 %v332
        %v549 = vpop.f32.mrf.mxu0
        %v550 = vadd.f32 0.0, %v549
        %551 = vdwg.mxu0
        %552 = vmatpush.msra.mxu0 %v526
        %553 = vmatpush.msra.mxu0 %v520
        %554 = vmatpush.msra.mxu0 %v514
        %555 = vmatpush.msra.mxu0 %v508
        %556 = vmatpush.msra.mxu0 %v502
        %557 = vmatpush.msra.mxu0 %v496
        %558 = vmatpush.msra.mxu0 %v490
        %559 = vmatpush.msra.mxu0 %v484
        %560 = vmatpush.msra.mxu0 %v478
        %561 = vmatpush.msra.mxu0 %v472
        %562 = vmatpush.msra.mxu0 %v466
        %563 = vmatpush.msra.mxu0 %v460
        %564 = vmatpush.msra.mxu0 %v454
        %565 = vmatpush.msra.mxu0 %v448
        %566 = vmatpush.msra.mxu0 %v442
        %567 = vmatpush.msra.mxu0 %v436
        %568 = vmatmul.f32.gmra.mxu0 %v333
        %v569 = vpop.f32.mrf.mxu0
        %v570 = vadd.f32 %v550, %v569
        %571 = vdwg.mxu0
        %572 = vmatpush.msra.mxu0 %v431
        %573 = vmatpush.msra.mxu0 %v425
        %574 = vmatpush.msra.mxu0 %v419
        %575 = vmatpush.msra.mxu0 %v413
        %576 = vmatpush.msra.mxu0 %v407
        %577 = vmatpush.msra.mxu0 %v401
        %578 = vmatpush.msra.mxu0 %v395
        %579 = vmatpush.msra.mxu0 %v389
        %580 = vmatpush.msra.mxu0 %v383
        %581 = vmatpush.msra.mxu0 %v377
        %582 = vmatpush.msra.mxu0 %v371
        %583 = vmatpush.msra.mxu0 %v365
        %584 = vmatpush.msra.mxu0 %v359
        %585 = vmatpush.msra.mxu0 %v353
        %586 = vmatpush.msra.mxu0 %v347
        %587 = vmatpush.msra.mxu0 %v341
        %588 = vmatmul.f32.gmra.mxu0 %v332
        %v589 = vpop.f32.mrf.mxu0
        %v590 = vadd.f32 0.0, %v589
        %591 = vdwg.mxu0
        %592 = vmatpush.msra.mxu0 %v527
        %593 = vmatpush.msra.mxu0 %v521
        %594 = vmatpush.msra.mxu0 %v515
        %595 = vmatpush.msra.mxu0 %v509
        %596 = vmatpush.msra.mxu0 %v503
        %597 = vmatpush.msra.mxu0 %v497
        %598 = vmatpush.msra.mxu0 %v491
        %599 = vmatpush.msra.mxu0 %v485
        %600 = vmatpush.msra.mxu0 %v479
        %601 = vmatpush.msra.mxu0 %v473
        %602 = vmatpush.msra.mxu0 %v467
        %603 = vmatpush.msra.mxu0 %v461
        %604 = vmatpush.msra.mxu0 %v455
        %605 = vmatpush.msra.mxu0 %v449
        %606 = vmatpush.msra.mxu0 %v443
        %607 = vmatpush.msra.mxu0 %v437
        %608 = vmatmul.f32.gmra.mxu0 %v333
        %v609 = vpop.f32.mrf.mxu0
        %v610 = vadd.f32 %v590, %v609
        %611 = vdwg.mxu0
        %612 = vmatpush.msra.mxu0 %v432
        %613 = vmatpush.msra.mxu0 %v426
        %614 = vmatpush.msra.mxu0 %v420
        %615 = vmatpush.msra.mxu0 %v414
        %616 = vmatpush.msra.mxu0 %v408
        %617 = vmatpush.msra.mxu0 %v402
        %618 = vmatpush.msra.mxu0 %v396
        %619 = vmatpush.msra.mxu0 %v390
        %620 = vmatpush.msra.mxu0 %v384
        %621 = vmatpush.msra.mxu0 %v378
        %622 = vmatpush.msra.mxu0 %v372
        %623 = vmatpush.msra.mxu0 %v366
        %624 = vmatpush.msra.mxu0 %v360
        %625 = vmatpush.msra.mxu0 %v354
        %626 = vmatpush.msra.mxu0 %v348
        %627 = vmatpush.msra.mxu0 %v342
        %628 = vmatmul.f32.gmra.mxu0 %v332
        %v629 = vpop.f32.mrf.mxu0
        %v630 = vadd.f32 0.0, %v629
        %631 = vdwg.mxu0
        %632 = vmatpush.msra.mxu0 %v528
        %633 = vmatpush.msra.mxu0 %v522
        %634 = vmatpush.msra.mxu0 %v516
        %635 = vmatpush.msra.mxu0 %v510
        %636 = vmatpush.msra.mxu0 %v504
        %637 = vmatpush.msra.mxu0 %v498
        %638 = vmatpush.msra.mxu0 %v492
        %639 = vmatpush.msra.mxu0 %v486
        %640 = vmatpush.msra.mxu0 %v480
        %641 = vmatpush.msra.mxu0 %v474
        %642 = vmatpush.msra.mxu0 %v468
        %643 = vmatpush.msra.mxu0 %v462
        %644 = vmatpush.msra.mxu0 %v456
        %645 = vmatpush.msra.mxu0 %v450
        %646 = vmatpush.msra.mxu0 %v444
        %647 = vmatpush.msra.mxu0 %v438
        %648 = vmatmul.f32.gmra.mxu0 %v333
        %v649 = vpop.f32.mrf.mxu0
        %v650 = vadd.f32 %v630, %v649
        %651 = vdwg.mxu0
        %652 = vmatpush.msra.mxu0 %v433
        %653 = vmatpush.msra.mxu0 %v427
        %654 = vmatpush.msra.mxu0 %v421
        %655 = vmatpush.msra.mxu0 %v415
        %656 = vmatpush.msra.mxu0 %v409
        %657 = vmatpush.msra.mxu0 %v403
        %658 = vmatpush.msra.mxu0 %v397
        %659 = vmatpush.msra.mxu0 %v391
        %660 = vmatpush.msra.mxu0 %v385
        %661 = vmatpush.msra.mxu0 %v379
        %662 = vmatpush.msra.mxu0 %v373
        %663 = vmatpush.msra.mxu0 %v367
        %664 = vmatpush.msra.mxu0 %v361
        %665 = vmatpush.msra.mxu0 %v355
        %666 = vmatpush.msra.mxu0 %v349
        %667 = vmatpush.msra.mxu0 %v343
        %668 = vmatmul.f32.gmra.mxu0 %v332
        %v669 = vpop.f32.mrf.mxu0
        %v670 = vadd.f32 0.0, %v669
        %671 = vdwg.mxu0
        %672 = vmatpush.msra.mxu0 %v529
        %673 = vmatpush.msra.mxu0 %v523
        %674 = vmatpush.msra.mxu0 %v517
        %675 = vmatpush.msra.mxu0 %v511
        %676 = vmatpush.msra.mxu0 %v505
        %677 = vmatpush.msra.mxu0 %v499
        %678 = vmatpush.msra.mxu0 %v493
        %679 = vmatpush.msra.mxu0 %v487
        %680 = vmatpush.msra.mxu0 %v481
        %681 = vmatpush.msra.mxu0 %v475
        %682 = vmatpush.msra.mxu0 %v469
        %683 = vmatpush.msra.mxu0 %v463
        %684 = vmatpush.msra.mxu0 %v457
        %685 = vmatpush.msra.mxu0 %v451
        %686 = vmatpush.msra.mxu0 %v445
        %687 = vmatpush.msra.mxu0 %v439
        %688 = vmatmul.f32.gmra.mxu0 %v333
        %v689 = vpop.f32.mrf.mxu0
        %v690 = vadd.f32 %v670, %v689
        %691 = vdwg.mxu0
        %692 = vmatpush.msra.mxu0 %v434
        %693 = vmatpush.msra.mxu0 %v428
        %694 = vmatpush.msra.mxu0 %v422
        %695 = vmatpush.msra.mxu0 %v416
        %696 = vmatpush.msra.mxu0 %v410
        %697 = vmatpush.msra.mxu0 %v404
        %698 = vmatpush.msra.mxu0 %v398
        %699 = vmatpush.msra.mxu0 %v392
        %700 = vmatpush.msra.mxu0 %v386
        %701 = vmatpush.msra.mxu0 %v380
        %702 = vmatpush.msra.mxu0 %v374
        %703 = vmatpush.msra.mxu0 %v368
        %704 = vmatpush.msra.mxu0 %v362
        %705 = vmatpush.msra.mxu0 %v356
        %706 = vmatpush.msra.mxu0 %v350
        %707 = vmatpush.msra.mxu0 %v344
        %708 = vmatmul.f32.gmra.mxu0 %v332
        %v709 = vpop.f32.mrf.mxu0
        %v710 = vadd.f32 0.0, %v709
        %711 = vdwg.mxu0
        %712 = vmatpush.msra.mxu0 %v530
        %713 = vmatpush.msra.mxu0 %v524
        %714 = vmatpush.msra.mxu0 %v518
        %715 = vmatpush.msra.mxu0 %v512
        %716 = vmatpush.msra.mxu0 %v506
        %717 = vmatpush.msra.mxu0 %v500
        %718 = vmatpush.msra.mxu0 %v494
        %719 = vmatpush.msra.mxu0 %v488
        %720 = vmatpush.msra.mxu0 %v482
        %721 = vmatpush.msra.mxu0 %v476
        %722 = vmatpush.msra.mxu0 %v470
        %723 = vmatpush.msra.mxu0 %v464
        %724 = vmatpush.msra.mxu0 %v458
        %725 = vmatpush.msra.mxu0 %v452
        %726 = vmatpush.msra.mxu0 %v446
        %727 = vmatpush.msra.mxu0 %v440
        %728 = vmatmul.f32.gmra.mxu0 %v333
        %v729 = vpop.f32.mrf.mxu0
        %v730 = vadd.f32 %v710, %v729
        %731 = vdwg.mxu0
        %732 = vmatpush.msra.mxu0 %v435
        %733 = vmatpush.msra.mxu0 %v429
        %734 = vmatpush.msra.mxu0 %v423
        %735 = vmatpush.msra.mxu0 %v417
        %736 = vmatpush.msra.mxu0 %v411
        %737 = vmatpush.msra.mxu0 %v405
        %738 = vmatpush.msra.mxu0 %v399
        %739 = vmatpush.msra.mxu0 %v393
        %740 = vmatpush.msra.mxu0 %v387
        %741 = vmatpush.msra.mxu0 %v381
        %742 = vmatpush.msra.mxu0 %v375
        %743 = vmatpush.msra.mxu0 %v369
        %744 = vmatpush.msra.mxu0 %v363
        %745 = vmatpush.msra.mxu0 %v357
        %746 = vmatpush.msra.mxu0 %v351
        %747 = vmatpush.msra.mxu0 %v345
        %748 = vmatmul.f32.gmra.mxu0 %v332
        %v749 = vpop.f32.mrf.mxu0
        %v750 = vadd.f32 0.0, %v749
        %751 = vdwg.mxu0
        %752 = vmatpush.msra.mxu0 %v531
        %753 = vmatpush.msra.mxu0 %v525
        %754 = vmatpush.msra.mxu0 %v519
        %755 = vmatpush.msra.mxu0 %v513
        %756 = vmatpush.msra.mxu0 %v507
        %757 = vmatpush.msra.mxu0 %v501
        %758 = vmatpush.msra.mxu0 %v495
        %759 = vmatpush.msra.mxu0 %v489
        %760 = vmatpush.msra.mxu0 %v483
        %761 = vmatpush.msra.mxu0 %v477
        %762 = vmatpush.msra.mxu0 %v471
        %763 = vmatpush.msra.mxu0 %v465
        %764 = vmatpush.msra.mxu0 %v459
        %765 = vmatpush.msra.mxu0 %v453
        %766 = vmatpush.msra.mxu0 %v447
        %767 = vmatpush.msra.mxu0 %v441
        %768 = vmatmul.f32.gmra.mxu0 %v333
        %v769 = vpop.f32.mrf.mxu0
        %v770 = vadd.f32 %v750, %v769
        %771 = vdwg.mxu0
        %v772 = vadd.f32 %v334, %v570
        %v773 = vadd.f32 %v335, %v610
        %v774 = vadd.f32 %v336, %v650
        %v775 = vadd.f32 %v337, %v690
        %v776 = vadd.f32 %v338, %v730
        %v777 = vadd.f32 %v339, %v770
        %778 = vst [vmem:[#allocation2] sm:$0xff] %v772
        %779 = vst [vmem:[#allocation2 + $0x8] sm:$0xff] %v773
        %780 = vst [vmem:[#allocation2 + $0x10] sm:$0xff] %v774
        %781 = vst [vmem:[#allocation2 + $0x18] sm:$0xff] %v775
        %782 = vst [vmem:[#allocation2 + $0x20] sm:$0xff] %v776
        %783 = vst [vmem:[#allocation2 + $0x28] sm:$0xff] %v777
        %v784 = vld [vmem:[#allocation3] sm:$0xff]
        %v785 = vld [vmem:[%s298] sm:$0xff]
        %v786 = vld [vmem:[%s298 + $0x8] sm:$0xff]
        %v787 = vld [vmem:[%s298 + $0x10] sm:$0xff]
        %v788 = vld [vmem:[%s298 + $0x18] sm:$0xff]
        %v789 = vld [vmem:[%s298 + $0x20] sm:$0xff]
        %v790 = vld [vmem:[%s298 + $0x28] sm:$0xff]
        %v791 = vld [vmem:[%s298 + $0x30] sm:$0xff]
        %v792 = vld [vmem:[%s298 + $0x38] sm:$0xff]
        %v793 = vld [vmem:[%s298 + $0x40] sm:$0xff]
        %v794 = vld [vmem:[%s298 + $0x48] sm:$0xff]
        %v795 = vld [vmem:[%s298 + $0x50] sm:$0xff]
        %v796 = vld [vmem:[%s298 + $0x58] sm:$0xff]
        %v797 = vld [vmem:[%s298 + $0x60] sm:$0xff]
        %v798 = vld [vmem:[%s298 + $0x68] sm:$0xff]
        %v799 = vld [vmem:[%s298 + $0x70] sm:$0xff]
        %v800 = vld [vmem:[%s298 + $0x78] sm:$0xff]
        %v801 = vld [vmem:[%s298 + $0x80] sm:$0xff]
        %v802 = vld [vmem:[%s298 + $0x88] sm:$0xff]
        %v803 = vld [vmem:[%s298 + $0x90] sm:$0xff]
        %v804 = vld [vmem:[%s298 + $0x98] sm:$0xff]
        %v805 = vld [vmem:[%s298 + $0xa0] sm:$0xff]
        %v806 = vld [vmem:[%s298 + $0xa8] sm:$0xff]
        %v807 = vld [vmem:[%s298 + $0xb0] sm:$0xff]
        %v808 = vld [vmem:[%s298 + $0xb8] sm:$0xff]
        %v809 = vld [vmem:[%s298 + $0xc0] sm:$0xff]
        %v810 = vld [vmem:[%s298 + $0xc8] sm:$0xff]
        %v811 = vld [vmem:[%s298 + $0xd0] sm:$0xff]
        %v812 = vld [vmem:[%s298 + $0xd8] sm:$0xff]
        %v813 = vld [vmem:[%s298 + $0xe0] sm:$0xff]
        %v814 = vld [vmem:[%s298 + $0xe8] sm:$0xff]
        %v815 = vld [vmem:[%s298 + $0xf0] sm:$0xff]
        %v816 = vld [vmem:[%s298 + $0xf8] sm:$0xff]
        %817 = vmatpush.msra.mxu0 %v800
        %818 = vmatpush.msra.mxu0 %v799
        %819 = vmatpush.msra.mxu0 %v798
        %820 = vmatpush.msra.mxu0 %v797
        %821 = vmatpush.msra.mxu0 %v796
        %822 = vmatpush.msra.mxu0 %v795
        %823 = vmatpush.msra.mxu0 %v794
        %824 = vmatpush.msra.mxu0 %v793
        %825 = vmatpush.msra.mxu0 %v792
        %826 = vmatpush.msra.mxu0 %v791
        %827 = vmatpush.msra.mxu0 %v790
        %828 = vmatpush.msra.mxu0 %v789
        %829 = vmatpush.msra.mxu0 %v788
        %830 = vmatpush.msra.mxu0 %v787
        %831 = vmatpush.msra.mxu0 %v786
        %832 = vmatpush.msra.mxu0 %v785
        %833 = vmatmul.f32.gmra.mxu0 %v332
        %v834 = vpop.f32.mrf.mxu0
        %v835 = vadd.f32 0.0, %v834
        %836 = vdwg.mxu0
        %837 = vmatpush.msra.mxu0 %v816
        %838 = vmatpush.msra.mxu0 %v815
        %839 = vmatpush.msra.mxu0 %v814
        %840 = vmatpush.msra.mxu0 %v813
        %841 = vmatpush.msra.mxu0 %v812
        %842 = vmatpush.msra.mxu0 %v811
        %843 = vmatpush.msra.mxu0 %v810
        %844 = vmatpush.msra.mxu0 %v809
        %845 = vmatpush.msra.mxu0 %v808
        %846 = vmatpush.msra.mxu0 %v807
        %847 = vmatpush.msra.mxu0 %v806
        %848 = vmatpush.msra.mxu0 %v805
        %849 = vmatpush.msra.mxu0 %v804
        %850 = vmatpush.msra.mxu0 %v803
        %851 = vmatpush.msra.mxu0 %v802
        %852 = vmatpush.msra.mxu0 %v801
        %853 = vmatmul.f32.gmra.mxu0 %v333
        %v854 = vpop.f32.mrf.mxu0
        %v855 = vadd.f32 %v835, %v854
        %856 = vdwg.mxu0
        %v857 = vadd.f32 %v784, %v855
        %vm858 = vcmask 64512
        %859 = vst.msk [vmem:[#allocation3] sm:$0xff] %vm858, %v857
        // Predicated region
        $region49: #{tpu_custom_call.1} parent=39 // pred_check
          %p860 = pneg %p300
        $region50: #{tpu_custom_call.1} parent=39 // pred_check_branch
          %862 = sbr.rel (%p860) target = $region52
        $region51: #{tpu_custom_call.1} parent=39 // pred_region
          %v863 = vld [vmem:[#allocation3] sm:$0xff]
          %v864 = vld [vmem:[%s4] sm:$0xff]
          %v865 = vld [vmem:[%s4 + $0x8] sm:$0xff]
          %v866 = vld [vmem:[%s4 + $0x10] sm:$0xff]
          %v867 = vld [vmem:[%s4 + $0x18] sm:$0xff]
          %v869 = vsel %vm858, %v863, 0
          %871 = vmatpush.msra.mxu0 0.0
          %872 = vmatpush.msra.mxu0 0.0
          %873 = vmatpush.msra.mxu0 0.0
          %874 = vmatpush.msra.mxu0 0.0
          %875 = vmatpush.msra.mxu0 0.0
          %876 = vmatpush.msra.mxu0 0.0
          %877 = vmatpush.msra.mxu0 0.0
          %878 = vmatpush.msra.mxu0 0.0
          %879 = vmatpush.msra.mxu0 0.0
          %880 = vmatpush.msra.mxu0 0.0
          %881 = vmatpush.msra.mxu0 0.0
          %882 = vmatpush.msra.mxu0 0.0
          %883 = vmatpush.msra.mxu0 0.0
          %884 = vmatpush.msra.mxu0 0.0
          %885 = vmatpush.msra.mxu0 0.0
          %886 = vmatpush.msra.mxu0 %v864
          %887 = vmatmul.f32.gmra.mxu0 %v869
          %v888 = vpop.f32.mrf.mxu0
          %v889 = vadd.f32 0.0, %v888
          %890 = vdwg.mxu0
          %891 = vmatpush.msra.mxu0 0.0
          %892 = vmatpush.msra.mxu0 0.0
          %893 = vmatpush.msra.mxu0 0.0
          %894 = vmatpush.msra.mxu0 0.0
          %895 = vmatpush.msra.mxu0 0.0
          %896 = vmatpush.msra.mxu0 0.0
          %897 = vmatpush.msra.mxu0 0.0
          %898 = vmatpush.msra.mxu0 0.0
          %899 = vmatpush.msra.mxu0 0.0
          %900 = vmatpush.msra.mxu0 0.0
          %901 = vmatpush.msra.mxu0 0.0
          %902 = vmatpush.msra.mxu0 0.0
          %903 = vmatpush.msra.mxu0 0.0
          %904 = vmatpush.msra.mxu0 0.0
          %905 = vmatpush.msra.mxu0 0.0
          %906 = vmatpush.msra.mxu0 %v865
          %907 = vmatmul.f32.gmra.mxu0 %v869
          %v908 = vpop.f32.mrf.mxu0
          %v909 = vadd.f32 0.0, %v908
          %910 = vdwg.mxu0
          %911 = vmatpush.msra.mxu0 0.0
          %912 = vmatpush.msra.mxu0 0.0
          %913 = vmatpush.msra.mxu0 0.0
          %914 = vmatpush.msra.mxu0 0.0
          %915 = vmatpush.msra.mxu0 0.0
          %916 = vmatpush.msra.mxu0 0.0
          %917 = vmatpush.msra.mxu0 0.0
          %918 = vmatpush.msra.mxu0 0.0
          %919 = vmatpush.msra.mxu0 0.0
          %920 = vmatpush.msra.mxu0 0.0
          %921 = vmatpush.msra.mxu0 0.0
          %922 = vmatpush.msra.mxu0 0.0
          %923 = vmatpush.msra.mxu0 0.0
          %924 = vmatpush.msra.mxu0 0.0
          %925 = vmatpush.msra.mxu0 0.0
          %926 = vmatpush.msra.mxu0 %v866
          %927 = vmatmul.f32.gmra.mxu0 %v869
          %v928 = vpop.f32.mrf.mxu0
          %v929 = vadd.f32 0.0, %v928
          %930 = vdwg.mxu0
          %931 = vmatpush.msra.mxu0 0.0
          %932 = vmatpush.msra.mxu0 0.0
          %933 = vmatpush.msra.mxu0 0.0
          %934 = vmatpush.msra.mxu0 0.0
          %935 = vmatpush.msra.mxu0 0.0
          %936 = vmatpush.msra.mxu0 0.0
          %937 = vmatpush.msra.mxu0 0.0
          %938 = vmatpush.msra.mxu0 0.0
          %939 = vmatpush.msra.mxu0 0.0
          %940 = vmatpush.msra.mxu0 0.0
          %941 = vmatpush.msra.mxu0 0.0
          %942 = vmatpush.msra.mxu0 0.0
          %943 = vmatpush.msra.mxu0 0.0
          %944 = vmatpush.msra.mxu0 0.0
          %945 = vmatpush.msra.mxu0 0.0
          %946 = vmatpush.msra.mxu0 %v867
          %947 = vmatmul.f32.gmra.mxu0 %v869
          %v948 = vpop.f32.mrf.mxu0
          %v949 = vadd.f32 0.0, %v948
          %950 = vdwg.mxu0
          %v951 = vld [vmem:[#allocation2] sm:$0xff]
          %v952 = vld [vmem:[#allocation2 + $0x8] sm:$0xff]
          %v953 = vld [vmem:[#allocation2 + $0x10] sm:$0xff]
          %v954 = vld [vmem:[#allocation2 + $0x18] sm:$0xff]
          %v955 = vld [vmem:[#allocation2 + $0x20] sm:$0xff]
          %v956 = vld [vmem:[#allocation2 + $0x28] sm:$0xff]
          %v957 = vadd.f32 %v951, %v889
          %v958 = vadd.f32 %v952, %v909
          %v959 = vadd.f32 %v953, %v929
          %v960 = vadd.f32 %v954, %v949
          %961 = vst [vmem:[%s282] sm:$0xff] %v957
          %962 = vst [vmem:[%s282 + $0x8] sm:$0xff] %v958
          %963 = vst [vmem:[%s282 + $0x10] sm:$0xff] %v959
          %964 = vst [vmem:[%s282 + $0x18] sm:$0xff] %v960
          %965 = vst [vmem:[%s282 + $0x20] sm:$0xff] %v955
          %966 = vst [vmem:[%s282 + $0x28] sm:$0xff] %v956
        $region52: #{tpu_custom_call.1} parent=39 // pred_fallthru
          _
        %s967 = sand.u32 %s162, 1
        %s968 = scalar_lea.sflag [#allocation6], %s967
        %s969 = sand.u32 %s162, 1
        %s970 = smul.addr %s969, 48
        %s971 = scalar_lea.vmem [#allocation7], %s970
        // Predicated region
        $region53: #{tpu_custom_call.1} parent=39 // pred_check
          %p972 = pneg %p172
        $region54: #{tpu_custom_call.1} parent=39 // pred_check_branch
          %974 = sbr.rel (%p972) target = $region56
        $region55: #{tpu_custom_call.1} parent=39 // pred_region
          %976 = vsyncadd %s968, 0
          %s977 = smul.addr %s24, 6
          %s978 = smul.addr %s977, 8
          %s979 = scalar_lea.hbm %s5, %s978
          %s981 = sshll.u32 %s971, 4
          %s982 = int_to_ptr.vmem [resolvable:$true] %s981
          %s983 = sshll.u32 %s979, 4
          %s984 = int_to_ptr.hbm [resolvable:$true] %s983
          %986 = dma.vmem_to_hbm [thread:$0]  %s982, 768, %s984, %s968
        $region56: #{tpu_custom_call.1} parent=39 // pred_fallthru
          _
      $region40: #{tpu_custom_call.1} parent=5 // pred_fallthru
        _
      %p987 = scmp.le.s32.totalorder 2, %s15
      // Predicated region
      $region57: #{tpu_custom_call.1} parent=5 // pred_check
        %p988 = pneg %p987
      $region58: #{tpu_custom_call.1} parent=5 // pred_check_branch
        %990 = sbr.rel (%p988) target = $region60
      $region59: #{tpu_custom_call.1} parent=5 // pred_region
        %s991 = ssub.s32 %s15, 2
        // Predicated region
        $region61: #{tpu_custom_call.1} parent=59 // pred_check
          %p992 = pneg %p178
        $region62: #{tpu_custom_call.1} parent=59 // pred_check_branch
          %994 = sbr.rel (%p992) target = $region64
        $region63: #{tpu_custom_call.1} parent=59 // pred_region
          %s995 = sand.u32 %s163, 1
          %s996 = scalar_lea.sflag [#allocation6], %s995
          %s997 = sand.u32 %s163, 1
          %s998 = smul.addr %s997, 48
          %s999 = scalar_lea.vmem [#allocation7], %s998
          %1001 = dma.done %s996, 768
        $region64: #{tpu_custom_call.1} parent=59 // pred_fallthru
          _
      $region60: #{tpu_custom_call.1} parent=5 // pred_fallthru
        _
    $region6: #{tpu_custom_call.1} parent=1 // loop_footer
      %s19 = sadd.s32 1, %s15
    $region7: #{tpu_custom_call.1} parent=1 // loop_footer_branch
      %14 = sbr.rel target = $region3
    $region8: #{tpu_custom_call.1} parent=1 // loop_exit
      _
    %1002 = vsyncpa [#allocation5], 1
    %s1003 = scalar_lea.sflag [#allocation5], 1
    %1004 = vsyncpa %s1003, 1
    %1005 = vsyncpa [#allocation6], 1
    %s1006 = scalar_lea.sflag [#allocation6], 1
    %1007 = vsyncpa %s1006, 1

</llo_original>
